<compile_context>
chip_gen: v7x
topology: tpu7x:2x2x1
jax: 0.10.0
libtpu: 0.0.40
codegen_flags: <defaults>
</compile_context>

<pallas_src>
import math
import functools

import jax
import jax.numpy as jnp
from jax.experimental import pallas as pl
from jax.experimental.pallas import tpu as pltpu


def _round_up(x, m):
    return ((x + m - 1) // m) * m


def _sdp_kernel(q_ref, k_ref, o_ref, *, scale, seq_valid):
    # q_ref: (sq, D) bf16 zero-padded queries for this batch element.
    # k_ref: (tk, D) bf16 zero-padded keys.
    # o_ref: (sq, tk) f32 lane-dense output slab.
    sq = o_ref.shape[0]

    # new_v = q @ k^T (unscaled).  bf16 operands, f32 accumulation (MXU-native);
    # contraction on the last dim of both operands -> no explicit transpose.
    newv = jnp.einsum("qd,kd->qk", q_ref[...], k_ref[...],
                      preferred_element_type=jnp.float32)           # (sq, tk) f32

    # All valid key columns (< seq_valid <= sq) live in the first sq lanes, so
    # the softmax only needs the (sq, sq) corner (16x fewer exp/VPU ops than the
    # full lane width).
    s = newv[:, :sq]                                                 # (sq, sq)
    col = jax.lax.broadcasted_iota(jnp.int32, s.shape, 1)
    valid = col < seq_valid
    m = jnp.max(jnp.where(valid, s, -jnp.inf), axis=-1, keepdims=True)
    # Fold the 1/sqrt(d_k) scale into the exp argument: softmax(scale*x)
    # == exp(scale*(x - max)) / sum.
    e = jnp.where(valid, jnp.exp((s - m) * scale), 0.0)
    denom = jnp.sum(e, axis=-1, keepdims=True)
    p = e * pl.reciprocal(denom, approx=True)                        # (sq, sq) f32

    # TODO(synk): torch.nn.Dropout(p=0.1) is stochastic in train mode; treated
    # as identity (deterministic / eval-mode semantics).

    # output = dropout(p) @ new_v.  The reference intentionally uses the
    # *unscaled* qk matrix as the values operand -- do not "fix" this.
    # Rows of `newv` past seq_valid are zero (zero-padded q) and p's columns
    # there are zero, so the padded contraction is exact.  Kept in f32: it is a
    # small fraction of the (tiny) FLOPs and keeps the values path exact; at
    # larger shapes cast p/newv to bf16 as well.
    out = jnp.dot(p, newv, preferred_element_type=jnp.float32)       # (sq, tk)
    o_ref[...] = out.astype(o_ref.dtype)


@functools.partial(jax.jit, static_argnames=("n_head", "d_k"))
def model_forward(q, k, v, *, n_head=1, d_k=64):
    """Mirrors Model.forward (n_head == 1 path).  `v` (and the weight_list
    parameters of the PyTorch module) never enter the reference forward's
    math; `v` is accepted only for signature parity."""
    del v
    B, S, D = q.shape
    if B % n_head != 0:
        raise ValueError("batch must be divisible by n_head")
    if n_head != 1:
        # The reference PyTorch forward raises a matmul/cat shape error here.
        raise ValueError("reference forward is only well-defined for n_head == 1")

    scale = 1.0 / math.sqrt(d_k)

    LANE, SUB = 128, 8
    sq = _round_up(S, SUB)    # padded query rows (sublane-aligned)
    tk = _round_up(S, LANE)   # padded key length (lane-dense scores / output)

    # Cast to bf16 and zero-pad the sequence dim only (D stays unpadded; the
    # block's last dim equals the full array dim).  Single fused cast+pad per
    # input under jit.
    q_pad = jnp.pad(q.astype(jnp.bfloat16), ((0, 0), (0, sq - S), (0, 0)))
    k_pad = jnp.pad(k.astype(jnp.bfloat16), ((0, 0), (0, tk - S), (0, 0)))

    flops = 2 * B * sq * tk * D + 2 * B * sq * sq * tk
    transcendentals = B * sq * sq + B * sq
    bytes_accessed = 2 * B * (sq + tk) * D + 4 * B * sq * tk

    kernel = functools.partial(_sdp_kernel, scale=scale, seq_valid=S)
    out = pl.pallas_call(
        kernel,
        out_shape=jax.ShapeDtypeStruct((B, sq, tk), jnp.float32),
        grid_spec=pltpu.PrefetchScalarGridSpec(
            num_scalar_prefetch=0,
            # One grid step per batch element; "parallel" lets v7x's 2 TCs split
            # the batch (neutral on v5e/v6e).  Per-step VMEM ~13 KiB.
            grid=(B,),
            in_specs=[
                pl.BlockSpec((None, sq, D), lambda b: (b, 0, 0)),
                pl.BlockSpec((None, tk, D), lambda b: (b, 0, 0)),
            ],
            out_specs=pl.BlockSpec((None, sq, tk), lambda b: (b, 0, 0)),
        ),
        compiler_params=pltpu.CompilerParams(
            dimension_semantics=("parallel",),
            # Let the wrapper-side pad/convert fuse into the custom call's
            # operands instead of materializing a separate HBM copy.
            allow_input_fusion=[True, True],
        ),
        cost_estimate=pl.CostEstimate(
            flops=flops,
            transcendentals=transcendentals,
            bytes_accessed=bytes_accessed,
        ),
    )(q_pad, k_pad)

    # Strip the lane/sublane padding back to the semantic (B, S, S) output.
    return out[:, :S, :S]


def _reference_forward(q, k, v, *, n_head=1, d_k=64):
    """Pure-JAX transcription of Model.forward (n_head == 1, eval-mode dropout)."""
    del v, n_head
    scale = 1.0 / math.sqrt(d_k)
    qk = jnp.einsum("bsd,btd->bst", q, k)        # new_v (unscaled)
    p = jax.nn.softmax(qk * scale, axis=2)       # softmax(new_k)
    return jnp.einsum("bst,btu->bsu", p, qk)


if __name__ == "__main__":
    key = jax.random.PRNGKey(0)
    B, S, D = 2, 8, 32          # batch, seq_len, d_model (small shapes)
    n_head, d_k = 1, 64         # d_k only enters as the 1/sqrt(d_k) scale

    kq, kk, kv = jax.random.split(key, 3)
    q = jax.random.normal(kq, (B, S, D), dtype=jnp.float32)
    k = jax.random.normal(kk, (B, S, D), dtype=jnp.float32)
    v = jax.random.normal(kv, (B, S, D), dtype=jnp.float32)
    # (The module's weight_list parameters are never consumed by forward.)

    out = model_forward(q, k, v, n_head=n_head, d_k=d_k)
    out = jax.block_until_ready(out)
    assert out.shape == (B, S, S)

    # Tight check: kernel math vs. a pure-JAX reference fed the same bf16-
    # quantized q/k operands (isolates padding/softmax/matmul correctness from
    # the intentional bf16 cast; tolerance covers the approx EUP reciprocal).
    q_q = q.astype(jnp.bfloat16).astype(jnp.float32)
    k_q = k.astype(jnp.bfloat16).astype(jnp.float32)
    ref_bf = _reference_forward(q_q, k_q, v, n_head=n_head, d_k=d_k)
    assert jnp.allclose(out, ref_bf, atol=5e-3, rtol=5e-3), float(
        jnp.max(jnp.abs(out - ref_bf)))

    # End-to-end check vs. the full-f32 reference; the looser tolerance covers
    # the bf16 quantization of the first-matmul operands.
    ref = _reference_forward(q, k, v, n_head=n_head, d_k=d_k)
    assert jnp.allclose(out, ref, atol=1e-1, rtol=1e-1), float(
        jnp.max(jnp.abs(out - ref)))

    print("KERNEL_OK")
</pallas_src>

<mosaic_0001>
module attributes {stable_mosaic.version = 11 : i64} {
  func.func @_sdp_kernel(%arg0: i32, %arg1: memref<1x8x32xbf16, #tpu.memory_space<vmem>>, %arg2: memref<1x128x32xbf16, #tpu.memory_space<vmem>>, %arg3: memref<1x8x128xf32, #tpu.memory_space<vmem>>) attributes {dimension_semantics = [#tpu.dimension_semantics<parallel>], iteration_bounds = array<i64: 2>, scalar_prefetch = 0 : i64, scratch_operands = 0 : i64, tpu.core_type = #tpu.core_type<tc>, window_params = [{transform_indices = @transform_0, window_bounds = array<i64: 1, 8, 32>}, {transform_indices = @transform_1, window_bounds = array<i64: 1, 128, 32>}, {transform_indices = @transform_2, window_bounds = array<i64: 1, 8, 128>}]} {
    %c0 = arith.constant 0 : index
    %c0_0 = arith.constant 0 : index
    %c0_1 = arith.constant 0 : index
    %0 = vector.load %arg1[%c0, %c0_0, %c0_1] : memref<1x8x32xbf16, #tpu.memory_space<vmem>>, vector<1x8x32xbf16>
    %1 = vector.shape_cast %0 : vector<1x8x32xbf16> to vector<8x32xbf16>
    %c0_2 = arith.constant 0 : index
    %c0_3 = arith.constant 0 : index
    %c0_4 = arith.constant 0 : index
    %2 = vector.load %arg2[%c0_2, %c0_3, %c0_4] : memref<1x128x32xbf16, #tpu.memory_space<vmem>>, vector<1x128x32xbf16>
    %3 = vector.shape_cast %2 : vector<1x128x32xbf16> to vector<128x32xbf16>
    "tpu.trace_start"() <{level = 10 : i32, message = "qd,kd->qk"}> : () -> ()
    %cst = arith.constant dense<0.000000e+00> : vector<8x128xf32>
    %4 = tpu.matmul %1, %3, %cst {dimension_numbers = #tpu.dot_dimension_numbers<[1], [1], [0], [0], [0, 0, 1, 0], [], []>} : vector<8x32xbf16>, vector<128x32xbf16>, vector<8x128xf32> -> vector<8x128xf32>
    "tpu.trace_stop"() : () -> ()
    %5 = vector.extract_strided_slice %4 {offsets = [0, 0], sizes = [8, 8], strides = [1, 1]} : vector<8x128xf32> to vector<8x8xf32>
    %6 = tpu.iota {dimensions = array<i32: 1>} : vector<8x8xi32>
    %c8_i32 = arith.constant 8 : i32
    %7 = vector.broadcast %c8_i32 : i32 to vector<8x8xi32>
    %8 = arith.cmpi slt, %6, %7 : vector<8x8xi32>
    %cst_5 = arith.constant 0xFF800000 : f32
    %9 = vector.broadcast %cst_5 : f32 to vector<8x8xf32>
    %10 = arith.select %8, %5, %9 : vector<8x8xi1>, vector<8x8xf32>
    %cst_6 = arith.constant dense<0xFF800000> : vector<8xf32>
    %11 = vector.multi_reduction <maximumf>, %10, %cst_6 [1] : vector<8x8xf32> to vector<8xf32>
    %12 = vector.shape_cast %11 : vector<8xf32> to vector<8x1xf32>
    %13 = vector.broadcast %12 : vector<8x1xf32> to vector<8x8xf32>
    %14 = arith.subf %5, %13 : vector<8x8xf32>
    %cst_7 = arith.constant 1.250000e-01 : f32
    %15 = vector.broadcast %cst_7 : f32 to vector<8x8xf32>
    %16 = arith.mulf %14, %15 : vector<8x8xf32>
    %17 = math.exp %16 : vector<8x8xf32>
    %cst_8 = arith.constant 0.000000e+00 : f32
    %18 = vector.broadcast %cst_8 : f32 to vector<8x8xf32>
    %19 = arith.select %8, %17, %18 : vector<8x8xi1>, vector<8x8xf32>
    %cst_9 = arith.constant dense<0.000000e+00> : vector<8xf32>
    %20 = vector.multi_reduction <add>, %19, %cst_9 [1] : vector<8x8xf32> to vector<8xf32>
    %21 = vector.shape_cast %20 : vector<8xf32> to vector<8x1xf32>
    %22 = tpu.reciprocal %21 {approx = true} : vector<8x1xf32> -> vector<8x1xf32>
    %23 = vector.broadcast %22 : vector<8x1xf32> to vector<8x8xf32>
    %24 = arith.mulf %19, %23 : vector<8x8xf32>
    %cst_10 = arith.constant dense<0.000000e+00> : vector<8x128xf32>
    %25 = tpu.matmul %24, %4, %cst_10 {dimension_numbers = #tpu.dot_dimension_numbers<[1], [0], [0], [1], [0, 0, 1, 1], [], []>} : vector<8x8xf32>, vector<8x128xf32>, vector<8x128xf32> -> vector<8x128xf32>
    %c0_11 = arith.constant 0 : index
    %c0_12 = arith.constant 0 : index
    %c0_13 = arith.constant 0 : index
    %26 = vector.load %arg3[%c0_11, %c0_12, %c0_13] : memref<1x8x128xf32, #tpu.memory_space<vmem>>, vector<1x8x128xf32>
    %27 = vector.shape_cast %26 : vector<1x8x128xf32> to vector<8x128xf32>
    %28 = vector.shape_cast %25 : vector<8x128xf32> to vector<1x8x128xf32>
    tpu.vector_store %arg3[%c0_11, %c0_12, %c0_13], %28 {strides = array<i32>} : memref<1x8x128xf32, #tpu.memory_space<vmem>>, vector<1x8x128xf32>,
    return
  }
  func.func @transform_0(%arg0: i32) -> (i32, i32, i32) {
    %c0_i32 = arith.constant 0 : i32
    %c0_i32_0 = arith.constant 0 : i32
    %c0_i32_1 = arith.constant 0 : i32
    return %arg0, %c0_i32, %c0_i32_0 : i32, i32, i32
  }
  func.func @transform_1(%arg0: i32) -> (i32, i32, i32) {
    %c0_i32 = arith.constant 0 : i32
    %c0_i32_0 = arith.constant 0 : i32
    %c0_i32_1 = arith.constant 0 : i32
    return %arg0, %c0_i32, %c0_i32_0 : i32, i32, i32
  }
  func.func @transform_2(%arg0: i32) -> (i32, i32, i32) {
    %c0_i32 = arith.constant 0 : i32
    %c0_i32_0 = arith.constant 0 : i32
    %c0_i32_1 = arith.constant 0 : i32
    return %arg0, %c0_i32, %c0_i32_0 : i32, i32, i32
  }
}

</mosaic_0001>

<llo_original>
// kernel: model_forward.2
$region0: #{model_forward.2}
  #allocation0 [shape = 'u32[]', space=smem, size = 0x4, offset = 0x4, fixed_abs, tag = 'smem constant byte address 0x4 - core index']
  #allocation1 [shape = 'u32[144,128]{1,0:T(1,128)}', space=vmem, size = 0x12000, scoped, tag = 'internal scratch']
  #allocation2 [shape = 'u32[2048]{0}', space=vmem, size = 0x2000, scoped, tag = 'scoped memory for model_forward.2']
  #allocation3 [shape = 'u32[2048]{0}', space=vmem, size = 0x2000, scoped, tag = 'scoped memory for model_forward.2']
  #allocation4 [shape = 'u32[2048]{0}', space=vmem, size = 0x2000, scoped, tag = 'scoped memory for model_forward.2']
  #allocation5 [shape = 'u32[2048]{0}', space=vmem, size = 0x2000, scoped, tag = 'scoped memory for model_forward.2']
  #allocation6 [shape = 'u32[2048]{0}', space=vmem, size = 0x2000, scoped, tag = 'scoped memory for model_forward.2']
  %s0 = inlined_call_operand.vmem [shape: bf16[2,8,32], index: 0, kind: input, shape index: {}]
  %s1 = inlined_call_operand.<no memory space> [shape: bf16[], index: 1, kind: input, shape index: {}]
  %s2 = inlined_call_operand.vmem [shape: f32[2,8,32], index: 2, kind: input, shape index: {}]
  %s3 = inlined_call_operand.hbm [shape: f32[2,8,128], index: 3, kind: output, shape index: {}]
  %s4 = sld [smem:[#allocation0]]
  $region41: #{model_forward.2} parent=0
    _
  %s6 = ssub.s32 1, %s4
  %s7 = scalar_select 0, %s6, %s4
  %v8 = vstv %s1
  %v9 = vunpack.i.l.bf16 %v8
  %v11 = vunpack.i.h.bf16 %v8
  $region1: #{model_forward.2} parent=0
    #allocation7 [shape = 'u8[8192]{0}', space=vmem, size = 0x2000, scoped, tag = 'output window, operand 0']
    #allocation8 [shape = 's32[2]{0}', space=sflag, size = 0x8, scoped, tag = 'scoped memory for model_forward.2']
    %13 = vsyncpa [#allocation8], 0
    %s14 = scalar_lea.sflag [#allocation8], 1
    %15 = vsyncpa %s14, 0
    loop: start=0, step=1, limit=4
    $region2: #{model_forward.2} parent=1 // loop_pre_header
      _
    $region3: #{model_forward.2} parent=1 // loop_header
      %s17 = sphi 0, %s21
      %p18 = scmp.ge.s32.totalorder %s17, 4
      %s27 = sphi 0, %s29
      %s30 = sphi 0, %s27
      %s31 = sphi 0, %s30
      %s47 = sphi 0, %s31
      %s53 = sphi 0, %s55
      %s56 = sphi 0, %s53
      %s57 = sphi 0, %s56
      %s73 = sphi 0, %s57
      %s79 = sphi 0, %s81
      %s82 = sphi 0, %s79
      %s83 = sphi 0, %s82
      %s99 = sphi 0, %s83
    $region4: #{model_forward.2} parent=1 // loop_header_branch
      %20 = sbr.rel (%p18) target = $region8
    $region5: #{model_forward.2} parent=1 // loop_body
      %s22 = ssub.s32 %s17, 1
      %s23 = ssub.s32 %s17, 2
      %s24 = sadd.s32 %s17, 1
      %s25 = ssub.s32 %s17, %s24
      %p26 = scmp.eq.s32.totalorder %s25, 0
      %s28 = sadd.s32 %s27, 1
      %s29 = scalar_select %p26, %s27, %s28
      %p32 = pneg %p26
      %p33 = scmp.eq.s32.totalorder %s17, 1
      %p34 = por %p32, %p33
      %p35 = scmp.ne.s32.totalorder %s27, %s30
      %p36 = scmp.eq.s32.totalorder %s17, 0
      %p37 = por %p35, %p36
      %p38 = scmp.ne.s32.totalorder %s27, %s30
      %p39 = scmp.eq.s32.totalorder %s22, 1
      %p40 = por %p38, %p39
      %p41 = scmp.ne.s32.totalorder %s30, %s31
      %p42 = scmp.eq.s32.totalorder %s22, 0
      %p43 = por %p41, %p42
      %p44 = scmp.ne.s32.totalorder %s30, %s31
      %p45 = scmp.eq.s32.totalorder %s23, 1
      %p46 = por %p44, %p45
      %p48 = scmp.ne.s32.totalorder %s31, %s47
      %p49 = scmp.eq.s32.totalorder %s23, 0
      %p50 = por %p48, %p49
      %s51 = ssub.s32 %s17, %s24
      %p52 = scmp.eq.s32.totalorder %s51, 0
      %s54 = sadd.s32 %s53, 1
      %s55 = scalar_select %p52, %s53, %s54
      %p58 = pneg %p52
      %p59 = scmp.eq.s32.totalorder %s17, 1
      %p60 = por %p58, %p59
      %p61 = scmp.ne.s32.totalorder %s53, %s56
      %p62 = scmp.eq.s32.totalorder %s17, 0
      %p63 = por %p61, %p62
      %p64 = scmp.ne.s32.totalorder %s53, %s56
      %p65 = scmp.eq.s32.totalorder %s22, 1
      %p66 = por %p64, %p65
      %p67 = scmp.ne.s32.totalorder %s56, %s57
      %p68 = scmp.eq.s32.totalorder %s22, 0
      %p69 = por %p67, %p68
      %p70 = scmp.ne.s32.totalorder %s56, %s57
      %p71 = scmp.eq.s32.totalorder %s23, 1
      %p72 = por %p70, %p71
      %p74 = scmp.ne.s32.totalorder %s57, %s73
      %p75 = scmp.eq.s32.totalorder %s23, 0
      %p76 = por %p74, %p75
      %s77 = ssub.s32 %s17, %s24
      %p78 = scmp.eq.s32.totalorder %s77, 0
      %s80 = sadd.s32 %s79, 1
      %s81 = scalar_select %p78, %s79, %s80
      %p84 = pneg %p78
      %p85 = scmp.eq.s32.totalorder %s17, 1
      %p86 = por %p84, %p85
      %p87 = scmp.ne.s32.totalorder %s79, %s82
      %p88 = scmp.eq.s32.totalorder %s17, 0
      %p89 = por %p87, %p88
      %p90 = scmp.ne.s32.totalorder %s79, %s82
      %p91 = scmp.eq.s32.totalorder %s22, 1
      %p92 = por %p90, %p91
      %p93 = scmp.ne.s32.totalorder %s82, %s83
      %p94 = scmp.eq.s32.totalorder %s22, 0
      %p95 = por %p93, %p94
      %p96 = scmp.ne.s32.totalorder %s82, %s83
      %p97 = scmp.eq.s32.totalorder %s23, 1
      %p98 = por %p96, %p97
      %p100 = scmp.ne.s32.totalorder %s83, %s99
      %p101 = scmp.eq.s32.totalorder %s23, 0
      %p102 = por %p100, %p101
      %p103 = scmp.le.s32.totalorder 1, %s17
      %p104 = scmp.lt.s32.totalorder %s17, 3
      %p105 = pnand %p103, %p104
      %p106 = pneg %p105
      // Predicated region
      $region9: #{model_forward.2} parent=5 // pred_check
        _
      $region10: #{model_forward.2} parent=5 // pred_check_branch
        %108 = sbr.rel (%p105) target = $region12
      $region11: #{model_forward.2} parent=5 // pred_region
        %s109 = ssub.s32 %s17, 1
      $region12: #{model_forward.2} parent=5 // pred_fallthru
        _
      %p110 = scmp.lt.s32.totalorder %s17, 2
      // Predicated region
      $region13: #{model_forward.2} parent=5 // pred_check
        %p111 = pneg %p110
      $region14: #{model_forward.2} parent=5 // pred_check_branch
        %113 = sbr.rel (%p111) target = $region16
      $region15: #{model_forward.2} parent=5 // pred_region
        // Predicated region
        $region17: #{model_forward.2} parent=15 // pred_check
          %p114 = pneg %p37
        $region18: #{model_forward.2} parent=15 // pred_check_branch
          %116 = sbr.rel (%p114) target = $region20
        $region19: #{model_forward.2} parent=15 // pred_region
          %p117 = scmp.lt.s32.totalorder %s17, 1
          %s118 = scalar_select %p117, %s17, 1
          %s119 = smul.addr %s118, 8
          %s120 = scalar_lea.vmem %s2, %s119
        $region20: #{model_forward.2} parent=15 // pred_fallthru
          _
        // Predicated region
        $region21: #{model_forward.2} parent=15 // pred_check
          %p121 = pneg %p63
        $region22: #{model_forward.2} parent=15 // pred_check_branch
          %123 = sbr.rel (%p121) target = $region24
        $region23: #{model_forward.2} parent=15 // pred_region
          %p124 = scmp.lt.s32.totalorder %s17, 1
          %s125 = scalar_select %p124, %s17, 1
          %s126 = smul.addr %s125, 4
          %s127 = scalar_lea.vmem %s0, %s126
        $region24: #{model_forward.2} parent=15 // pred_fallthru
          _
      $region16: #{model_forward.2} parent=5 // pred_fallthru
        _
      %p128 = scmp.le.s32.totalorder 1, %s17
      %p129 = scmp.lt.s32.totalorder %s17, 3
      %p130 = pnand %p128, %p129
      %p131 = pneg %p130
      // Predicated region
      $region25: #{model_forward.2} parent=5 // pred_check
        _
      $region26: #{model_forward.2} parent=5 // pred_check_branch
        %133 = sbr.rel (%p130) target = $region28
      $region27: #{model_forward.2} parent=5 // pred_region
        #allocation9 [shape = 'u8[2048]{0}', space=vmem, size = 0x800, dematerialized = true, scoped, tag = 'FusionAdapter Buffer %fusion.2 = bf16[2,8,32]{2,1,0:T(8,128)(2,1)} fusion(%param_2.1), kind=kLoop, calls=%fused_computation.2.clone, metadata={op_name="jit(model_forward)/convert_element_type" stack_frame_id=7}']
        #allocation10 [shape = 'u8[32768]{0}', space=vmem, size = 0x8000, dematerialized = true, scoped, tag = 'FusionAdapter Buffer %fusion.1 = bf16[2,128,32]{2,1,0:T(8,128)(2,1)} fusion(%param_0.2, %param_1.3), kind=kLoop, calls=%fused_computation.1.clone, metadata={op_name="jit(model_forward)/jit(_pad)/pad" stack_frame_id=10}']
        %s134 = ssub.s32 %s17, 1
        %p135 = scmp.lt.s32.totalorder %s22, 1
        %s136 = scalar_select %p135, %s22, 1
        %s137 = smul.addr %s136, 8
        %s138 = scalar_lea.vmem %s2, %s137
        %p139 = pneg %p43
        %p140 = pneg %p40
        %p141 = scmp.lt.s32.totalorder %s22, 1
        %s142 = scalar_select %p141, %s22, 1
        %s143 = smul.addr %s142, 4
        %s144 = scalar_lea.vmem %s0, %s143
        %p145 = pneg %p69
        %p146 = pneg %p66
        %p147 = pneg %p95
        %p148 = pneg %p92
        %s149 = sand.u32 %s82, 1
        %s150 = scalar_lea.sflag [#allocation8], %s149
        %s151 = sand.u32 %s82, 1
        %s152 = smul.addr %s151, 8
        %s153 = scalar_lea.vmem [#allocation7], %s152
        %p154 = scmp.lt.s32.totalorder %s22, 1
        %s155 = scalar_select %p154, %s22, 1
        %s156 = smul.addr %s155, 8
        %s157 = scalar_lea.vmem %s2, %s156
        %p158 = scmp.lt.s32.totalorder %s22, 1
        %s159 = scalar_select %p158, %s22, 1
        %s160 = smul.addr %s159, 4
        %s161 = scalar_lea.vmem %s0, %s160
        %v162 = vld [vmem:[%s157] sm:$0xff]
        %163 = xla_tuple %v162
        %164 = xla_tuple %163
        %165 = xla_tuple %v162
        %v166 = vpack.c.bf16 0.0, %v162
        %168 = vst [vmem:[#allocation9] sm:$0xf] %v166
        %s170 = sor.u32 255, 127
        %s171 = sand.u32 %s170, 85
        %s172 = sshrl.u32 %s171, 1
        %s173 = sor.u32 %s171, %s172
        %s174 = sand.u32 51, %s173
        %s175 = sshrl.u32 %s174, 2
        %s176 = sor.u32 %s174, %s175
        %s177 = sand.u32 15, %s176
        %v178 = vld [vmem:[%s161] sm:%s177]
        %v179 = vunpack.c.l.bf16 %v178
        %v180 = vunpack.c.h.bf16 %v178
        %v181 = vlaneseq
        %v182 = vand.u32 %v181, 127
        %vm184 = vcmp.lt.s32.totalorder %v182, 32
        %v185 = vsel %vm184, %v179, %v9
        %v186 = vpack.c.bf16 0.0, %v185
        %188 = vst [vmem:[#allocation10] sm:$0xf] %v186
        %s189 = scalar_lea.vmem [#allocation10], 4
        %v190 = vpack.c.bf16 0.0, %v9
        %192 = vst [vmem:[%s189] sm:$0xf] %v190
        %s193 = scalar_lea.vmem [#allocation10], 8
        %v194 = vpack.c.bf16 0.0, %v9
        %196 = vst [vmem:[%s193] sm:$0xf] %v194
        %s197 = scalar_lea.vmem [#allocation10], 12
        %v198 = vpack.c.bf16 0.0, %v9
        %200 = vst [vmem:[%s197] sm:$0xf] %v198
        %s201 = scalar_lea.vmem [#allocation10], 16
        %v202 = vpack.c.bf16 0.0, %v9
        %204 = vst [vmem:[%s201] sm:$0xf] %v202
        %s205 = scalar_lea.vmem [#allocation10], 20
        %v206 = vpack.c.bf16 0.0, %v9
        %208 = vst [vmem:[%s205] sm:$0xf] %v206
        %s209 = scalar_lea.vmem [#allocation10], 24
        %v210 = vpack.c.bf16 0.0, %v9
        %212 = vst [vmem:[%s209] sm:$0xf] %v210
        %s213 = scalar_lea.vmem [#allocation10], 28
        %v214 = vpack.c.bf16 0.0, %v9
        %216 = vst [vmem:[%s213] sm:$0xf] %v214
        %s217 = scalar_lea.vmem [#allocation10], 32
        %v218 = vpack.c.bf16 0.0, %v9
        %220 = vst [vmem:[%s217] sm:$0xf] %v218
        %s221 = scalar_lea.vmem [#allocation10], 36
        %v222 = vpack.c.bf16 0.0, %v9
        %224 = vst [vmem:[%s221] sm:$0xf] %v222
        %s225 = scalar_lea.vmem [#allocation10], 40
        %v226 = vpack.c.bf16 0.0, %v9
        %228 = vst [vmem:[%s225] sm:$0xf] %v226
        %s229 = scalar_lea.vmem [#allocation10], 44
        %v230 = vpack.c.bf16 0.0, %v9
        %232 = vst [vmem:[%s229] sm:$0xf] %v230
        %s233 = scalar_lea.vmem [#allocation10], 48
        %v234 = vpack.c.bf16 0.0, %v9
        %236 = vst [vmem:[%s233] sm:$0xf] %v234
        %s237 = scalar_lea.vmem [#allocation10], 52
        %v238 = vpack.c.bf16 0.0, %v9
        %240 = vst [vmem:[%s237] sm:$0xf] %v238
        %s241 = scalar_lea.vmem [#allocation10], 56
        %v242 = vpack.c.bf16 0.0, %v9
        %244 = vst [vmem:[%s241] sm:$0xf] %v242
        %s245 = scalar_lea.vmem [#allocation10], 60
        %v246 = vpack.c.bf16 0.0, %v9
        %248 = vst [vmem:[%s245] sm:$0xf] %v246
        %v250 = vld [vmem:[#allocation9] sm:$0xf]
        %v251 = vld [vmem:[#allocation10] sm:$0xf]
        %v252 = vld [vmem:[#allocation10 + $0x4] sm:$0xf]
        %v253 = vld [vmem:[#allocation10 + $0x8] sm:$0xf]
        %v254 = vld [vmem:[#allocation10 + $0xc] sm:$0xf]
        %v255 = vld [vmem:[#allocation10 + $0x10] sm:$0xf]
        %v256 = vld [vmem:[#allocation10 + $0x14] sm:$0xf]
        %v257 = vld [vmem:[#allocation10 + $0x18] sm:$0xf]
        %v258 = vld [vmem:[#allocation10 + $0x1c] sm:$0xf]
        %v259 = vld [vmem:[#allocation10 + $0x20] sm:$0xf]
        %v260 = vld [vmem:[#allocation10 + $0x24] sm:$0xf]
        %v261 = vld [vmem:[#allocation10 + $0x28] sm:$0xf]
        %v262 = vld [vmem:[#allocation10 + $0x2c] sm:$0xf]
        %v263 = vld [vmem:[#allocation10 + $0x30] sm:$0xf]
        %v264 = vld [vmem:[#allocation10 + $0x34] sm:$0xf]
        %v265 = vld [vmem:[#allocation10 + $0x38] sm:$0xf]
        %v266 = vld [vmem:[#allocation10 + $0x3c] sm:$0xf]
        %v283 = vunpack.c.l.b16 %v251
        %v284 = vunpack.c.l.b16 %v252
        %v285 = vunpack.c.l.b16 %v253
        %v286 = vunpack.c.l.b16 %v254
        %v287 = vunpack.c.l.b16 %v255
        %v288 = vunpack.c.l.b16 %v256
        %v289 = vunpack.c.l.b16 %v257
        %v290 = vunpack.c.l.b16 %v258
        %v291 = vunpack.c.l.b16 %v259
        %v292 = vunpack.c.l.b16 %v260
        %v293 = vunpack.c.l.b16 %v261
        %v294 = vunpack.c.l.b16 %v262
        %v295 = vunpack.c.l.b16 %v263
        %v296 = vunpack.c.l.b16 %v264
        %v297 = vunpack.c.l.b16 %v265
        %v298 = vunpack.c.l.b16 %v266
        %v299 = vpack.c.b16 %v284, %v283
        %v300 = vpack.c.b16 %v286, %v285
        %v301 = vpack.c.b16 %v288, %v287
        %v302 = vpack.c.b16 %v290, %v289
        %v303 = vpack.c.b16 %v292, %v291
        %v304 = vpack.c.b16 %v294, %v293
        %v305 = vpack.c.b16 %v296, %v295
        %v306 = vpack.c.b16 %v298, %v297
        %vm307 = vcmask 261120
        %v309 = vsel %vm307, %v250, 0
        %v312 = vsel %vm307, %v299, 0
        %v315 = vsel %vm307, %v300, 0
        %v318 = vsel %vm307, %v301, 0
        %v321 = vsel %vm307, %v302, 0
        %v324 = vsel %vm307, %v303, 0
        %v327 = vsel %vm307, %v304, 0
        %v330 = vsel %vm307, %v305, 0
        %v333 = vsel %vm307, %v306, 0
        %335 = vmatprep.subr.bf16.mxu0 0
        %336 = vmatpush1.bf16.xpose.msra.mxu0 %v312
        %337 = vmatprep.subr.bf16.mxu0 0
        %338 = vmatpush1.bf16.xpose.msra.mxu0 %v315
        %339 = vmatprep.subr.bf16.mxu0 0
        %340 = vmatpush1.bf16.xpose.msra.mxu0 %v318
        %341 = vmatprep.subr.bf16.mxu0 0
        %342 = vmatpush1.bf16.xpose.msra.mxu0 %v321
        %343 = vmatprep.subr.bf16.mxu0 0
        %344 = vmatpush1.bf16.xpose.msra.mxu0 %v324
        %345 = vmatprep.subr.bf16.mxu0 0
        %346 = vmatpush1.bf16.xpose.msra.mxu0 %v327
        %347 = vmatprep.subr.bf16.mxu0 0
        %348 = vmatpush1.bf16.xpose.msra.mxu0 %v330
        %349 = vmatprep.subr.bf16.mxu0 0
        %350 = vmatpush1.bf16.xpose.msra.mxu0 %v333
        %351 = vmatprep.subr.bf16.mxu0 0
        %352 = vmatpush1.bf16.xpose.msra.mxu0 0
        %353 = vmatprep.subr.bf16.mxu0 0
        %354 = vmatpush1.bf16.xpose.msra.mxu0 0
        %355 = vmatprep.subr.bf16.mxu0 0
        %356 = vmatpush1.bf16.xpose.msra.mxu0 0
        %357 = vmatprep.subr.bf16.mxu0 0
        %358 = vmatpush1.bf16.xpose.msra.mxu0 0
        %359 = vmatprep.subr.bf16.mxu0 0
        %360 = vmatpush1.bf16.xpose.msra.mxu0 0
        %361 = vmatprep.subr.bf16.mxu0 0
        %362 = vmatpush1.bf16.xpose.msra.mxu0 0
        %363 = vmatprep.subr.bf16.mxu0 0
        %364 = vmatpush1.bf16.xpose.msra.mxu0 0
        %365 = vmatprep.subr.bf16.mxu0 0
        %366 = vmatpush1.bf16.xpose.msra.mxu0 0
        %367 = vmatprep.mubr.bf16.mxu0 0
        %368 = vmatmul.mubr.bf16.gmra.mrb[0].mxu0 %v309
        %v369 = vpop.f32.mrb[0].mxu0
        %v370 = vadd.f32 0.0, %v369
        %v371 = vpop.f32.mrb[0].mxu0
        %v372 = vpop.f32.mrb[0].mxu0
        %v373 = vpop.f32.mrb[0].mxu0
        %374 = vdwg.mxu0
        %v375 = vlaneseq
        %v376 = vand.u32 %v375, 127
        %vm377 = vcmp.lt.s32.totalorder %v376, 8
        %v378 = vsel %vm377, %v370, -inf
        %vm379 = vcmask 64512
        %v380 = vsel %vm379, %v378, -inf
        %381 = vmax.xlane.f32.xlu0 %v380
        %v382 = vpop.xlane.xlu0 %381
        %v383 = vsub.f32 %v370, %v382
        %v384 = vmul.f32 %v383, 0.125
        %v385 = vmul.f32 %v384, 1.442695
        %v386 = vpow.pop %v385
        %v387 = vsel %vm377, %v386, 0.0
        %v388 = vsel %vm379, %v387, 0.0
        %389 = vadd.xlane.f32.xlu0 %v388
        %v390 = vpop.xlane.xlu0 %389
        %v391 = vrcp.pop %v390
        %v392 = vmul.f32 %v387, %v391
        %v394 = vsel %vm379, %v392, 0
        %396 = vmatprep.subr.mxu0 0.0
        %397 = vmatpush1.msra.mxu0 %v370
        %398 = vmatprep.subr.mxu0 0.0
        %399 = vmatpush1.msra.mxu0 0.0
        %400 = vmatprep.subr.mxu0 0.0
        %401 = vmatpush1.msra.mxu0 0.0
        %402 = vmatprep.subr.mxu0 0.0
        %403 = vmatpush1.msra.mxu0 0.0
        %404 = vmatprep.subr.mxu0 0.0
        %405 = vmatpush1.msra.mxu0 0.0
        %406 = vmatprep.subr.mxu0 0.0
        %407 = vmatpush1.msra.mxu0 0.0
        %408 = vmatprep.subr.mxu0 0.0
        %409 = vmatpush1.msra.mxu0 0.0
        %410 = vmatprep.subr.mxu0 0.0
        %411 = vmatpush1.msra.mxu0 0.0
        %412 = vmatprep.subr.mxu0 0.0
        %413 = vmatpush1.msra.mxu0 0.0
        %414 = vmatprep.subr.mxu0 0.0
        %415 = vmatpush1.msra.mxu0 0.0
        %416 = vmatprep.subr.mxu0 0.0
        %417 = vmatpush1.msra.mxu0 0.0
        %418 = vmatprep.subr.mxu0 0.0
        %419 = vmatpush1.msra.mxu0 0.0
        %420 = vmatprep.subr.mxu0 0.0
        %421 = vmatpush1.msra.mxu0 0.0
        %422 = vmatprep.subr.mxu0 0.0
        %423 = vmatpush1.msra.mxu0 0.0
        %424 = vmatprep.subr.mxu0 0.0
        %425 = vmatpush1.msra.mxu0 0.0
        %426 = vmatprep.subr.mxu0 0.0
        %427 = vmatpush1.msra.mxu0 0.0
        %428 = vmatprep.subr.mxu0 0.0
        %429 = vmatpush1.msra.mxu0 0.0
        %430 = vmatprep.subr.mxu0 0.0
        %431 = vmatpush1.msra.mxu0 0.0
        %432 = vmatprep.subr.mxu0 0.0
        %433 = vmatpush1.msra.mxu0 0.0
        %434 = vmatprep.subr.mxu0 0.0
        %435 = vmatpush1.msra.mxu0 0.0
        %436 = vmatprep.subr.mxu0 0.0
        %437 = vmatpush1.msra.mxu0 0.0
        %438 = vmatprep.subr.mxu0 0.0
        %439 = vmatpush1.msra.mxu0 0.0
        %440 = vmatprep.subr.mxu0 0.0
        %441 = vmatpush1.msra.mxu0 0.0
        %442 = vmatprep.subr.mxu0 0.0
        %443 = vmatpush1.msra.mxu0 0.0
        %444 = vmatprep.subr.mxu0 0.0
        %445 = vmatpush1.msra.mxu0 0.0
        %446 = vmatprep.subr.mxu0 0.0
        %447 = vmatpush1.msra.mxu0 0.0
        %448 = vmatprep.subr.mxu0 0.0
        %449 = vmatpush1.msra.mxu0 0.0
        %450 = vmatprep.subr.mxu0 0.0
        %451 = vmatpush1.msra.mxu0 0.0
        %452 = vmatprep.subr.mxu0 0.0
        %453 = vmatpush1.msra.mxu0 0.0
        %454 = vmatprep.subr.mxu0 0.0
        %455 = vmatpush1.msra.mxu0 0.0
        %456 = vmatprep.subr.mxu0 0.0
        %457 = vmatpush1.msra.mxu0 0.0
        %458 = vmatprep.subr.mxu0 0.0
        %459 = vmatpush1.msra.mxu0 0.0
        %460 = vmatprep.mubr.f32.mxu0 0.0
        %461 = vmatmul.mubr.f32.gmra.mrb[0].mxu0 %v394
        %v462 = vpop.f32.mrb[0].mxu0
        %v463 = vadd.f32 0.0, %v462
        %v464 = vpop.f32.mrb[0].mxu0
        %465 = vdwg.mxu0
        %466 = vst [vmem:[%s153] sm:$0xff] %v463
        %s467 = sand.u32 %s82, 1
        %s468 = scalar_lea.sflag [#allocation8], %s467
        %s469 = sand.u32 %s82, 1
        %s470 = smul.addr %s469, 8
        %s471 = scalar_lea.vmem [#allocation7], %s470
        // Predicated region
        $region29: #{model_forward.2} parent=27 // pred_check
          %p472 = pneg %p92
        $region30: #{model_forward.2} parent=27 // pred_check_branch
          %474 = sbr.rel (%p472) target = $region32
        $region31: #{model_forward.2} parent=27 // pred_region
          %s476 = ssub.s32 128, 128
          %477 = vsyncadd %s468, %s476
          %s478 = smul.addr %s22, 128
          %s479 = scalar_lea.hbm %s3, %s478
          %s481 = sshll.u32 %s471, 4
          %s482 = int_to_ptr.vmem [resolvable:$true] %s481
          %484 = dma.vmem_to_hbm [thread:$0]  %s482, 128, %s479, %s468
        $region32: #{model_forward.2} parent=27 // pred_fallthru
          _
      $region28: #{model_forward.2} parent=5 // pred_fallthru
        _
      %p485 = scmp.le.s32.totalorder 2, %s17
      // Predicated region
      $region33: #{model_forward.2} parent=5 // pred_check
        %p486 = pneg %p485
      $region34: #{model_forward.2} parent=5 // pred_check_branch
        %488 = sbr.rel (%p486) target = $region36
      $region35: #{model_forward.2} parent=5 // pred_region
        %s489 = ssub.s32 %s17, 2
        // Predicated region
        $region37: #{model_forward.2} parent=35 // pred_check
          %p490 = pneg %p98
        $region38: #{model_forward.2} parent=35 // pred_check_branch
          %492 = sbr.rel (%p490) target = $region40
        $region39: #{model_forward.2} parent=35 // pred_region
          %s493 = sand.u32 %s83, 1
          %s494 = scalar_lea.sflag [#allocation8], %s493
          %s495 = sand.u32 %s83, 1
          %s496 = smul.addr %s495, 8
          %s497 = scalar_lea.vmem [#allocation7], %s496
          %498 = dma.done %s494, 128
        $region40: #{model_forward.2} parent=35 // pred_fallthru
          _
      $region36: #{model_forward.2} parent=5 // pred_fallthru
        _
    $region6: #{model_forward.2} parent=1 // loop_footer
      %s21 = sadd.s32 1, %s17
    $region7: #{model_forward.2} parent=1 // loop_footer_branch
      %16 = sbr.rel target = $region3
    $region8: #{model_forward.2} parent=1 // loop_exit
      _
    %499 = vsyncpa [#allocation8], 1
    %s500 = scalar_lea.sflag [#allocation8], 1
    %501 = vsyncpa %s500, 1

</llo_original>
